<compile_context>
chip_gen: v7x
topology: tpu7x:2x2x1
jax: 0.10.0
libtpu: 0.0.40
codegen_flags: <defaults>
</compile_context>

<pallas_src>
import functools

import jax
import jax.numpy as jnp
from jax.experimental import pallas as pl
from jax.experimental.pallas import tpu as pltpu


def ensemble_kernel(x_ref, w1t_ref, b1_ref, w2t_ref, b2_ref, o_ref, *, mxu_dtype):
    """One batch tile per grid step; Linear -> SiLU -> Linear fully fused.

    Per-tile shapes (batch on sublanes):
      x_ref   : (TM, F_IN)    streamed per grid step
      w1t_ref : (F_IN, H)     resident across the grid (w1^T, maybe bf16)
      b1_ref  : (1, H)        resident
      w2t_ref : (H, F_OUT)    resident (w2^T, maybe bf16)
      b2_ref  : (1, F_OUT)    resident
      o_ref   : (TM, F_OUT)
    """
    x = x_ref[...].astype(mxu_dtype)                                  # (TM, F_IN)

    # ---- Layer 1 on the MXU (K=4 pads internally; vex slot was idle) ------
    h = jnp.dot(x, w1t_ref[...], preferred_element_type=jnp.float32)  # (TM, H) f32
    h = h + b1_ref[...]                                               # (1,H) bcast

    # ---- SiLU: one EUP tanh + 3 VALU ops ----------------------------------
    g = 0.5 * h
    h = g * (jnp.tanh(g) + 1.0)                                       # == h*sigmoid(h)

    # ---- Layer 2 on the MXU (F_OUT=2 output rows pad internally) ----------
    out = jnp.dot(h.astype(mxu_dtype), w2t_ref[...],
                  preferred_element_type=jnp.float32)                 # (TM, F_OUT)
    out = out + b2_ref[...]
    o_ref[...] = out.astype(o_ref.dtype)


@functools.partial(jax.jit, static_argnames=("block_n", "use_bf16_mxu"))
def ensemble_forward(x, w1, b1, w2, b2, *, block_n=2048, use_bf16_mxu=False):
    """Forward pass of `Ensemble`. x: (N, 4) -> (N, 2).

    Weights are in PyTorch layout: w1 (H, 4), b1 (H,), w2 (2, H), b2 (2,).
    """
    n, f_in = x.shape
    hidden = w1.shape[0]
    f_out = w2.shape[0]

    # Pad the ragged last batch tile (handled here, not by the caller).
    n_pad = pl.cdiv(n, block_n) * block_n
    xp = x if n_pad == n else jnp.pad(x, ((0, n_pad - n), (0, 0)))

    mxu_dtype = jnp.bfloat16 if use_bf16_mxu else x.dtype
    w1t = w1.T.astype(mxu_dtype)                 # (F_IN, H)
    w2t = w2.T.astype(mxu_dtype)                 # (H, F_OUT)
    b1r = b1.reshape(1, hidden).astype(jnp.float32)
    b2r = b2.reshape(1, f_out).astype(jnp.float32)

    # Per-step VMEM footprint is tiny (x 2*TM*4*4B, out 2*TM*2*4B, h ~TM*H*4B);
    # only raise the scoped-VMEM limit if block_n is pushed very large (v7x
    # has 64 MiB physical / 32 MiB default scoped).
    cp_kwargs = dict(dimension_semantics=("parallel",))
    if block_n >= 8192:
        cp_kwargs["vmem_limit_bytes"] = 64 << 20

    kernel = functools.partial(ensemble_kernel, mxu_dtype=mxu_dtype)
    out = pl.pallas_call(
        kernel,
        out_shape=jax.ShapeDtypeStruct((n_pad, f_out), x.dtype),
        grid=(n_pad // block_n,),
        in_specs=[
            pl.BlockSpec((block_n, f_in), lambda i: (i, 0)),    # x tile (streams)
            pl.BlockSpec((f_in, hidden), lambda i: (0, 0)),     # w1^T (resident)
            pl.BlockSpec((1, hidden), lambda i: (0, 0)),        # b1   (resident)
            pl.BlockSpec((hidden, f_out), lambda i: (0, 0)),    # w2^T (resident)
            pl.BlockSpec((1, f_out), lambda i: (0, 0)),         # b2   (resident)
        ],
        out_specs=pl.BlockSpec((block_n, f_out), lambda i: (i, 0)),
        compiler_params=pltpu.CompilerParams(**cp_kwargs),      # v7x: 2 TCs split batch
    )(xp, w1t, b1r, w2t, b2r)

    return out[:n] if n_pad != n else out


def init_params(key, hidden=256, f_in=4, f_out=2, dtype=jnp.float32):
    """Deterministic init mirroring the PyTorch module (PyTorch weight layout).

    - mlp[0].weight [H, 4]: kaiming_normal_(mode='fan_out', nonlinearity='relu')
      -> std = sqrt(2 / fan_out) = sqrt(2 / H).
    - mlp[2].weight [2, H]: xavier_normal_ -> std = sqrt(2 / (H + 2)).
    - biases: 0.
    """
    k1, k2 = jax.random.split(key)
    std1 = (2.0 / hidden) ** 0.5
    std2 = (2.0 / (hidden + f_out)) ** 0.5
    w1 = (jax.random.normal(k1, (hidden, f_in), dtype) * std1).astype(dtype)
    b1 = jnp.zeros((hidden,), dtype)
    w2 = (jax.random.normal(k2, (f_out, hidden), dtype) * std2).astype(dtype)
    b2 = jnp.zeros((f_out,), dtype)
    return w1, b1, w2, b2


def reference_forward(x, w1, b1, w2, b2):
    h = x @ w1.T + b1
    h = h * jax.nn.sigmoid(h)
    return h @ w2.T + b2


if __name__ == "__main__":
    key = jax.random.PRNGKey(0)
    kx, kp = jax.random.split(key)

    hidden, f_in, f_out = 256, 4, 2          # module default mlp_hidden_size=256
    w1, b1, w2, b2 = init_params(kp, hidden=hidden, f_in=f_in, f_out=f_out)

    # Small test tile so the multi-step "parallel" grid + ragged-tile padding
    # are exercised even at small batch; production default is block_n=2048.
    test_block_n = 256

    ok = True
    # (n, use_bf16_mxu, atol/rtol)
    cases = [
        (600, False, 1e-4),   # 3 grid steps incl. a padded ragged tile, f32 MXU
        (8, False, 1e-4),     # tiny batch, single (padded) tile
        (600, True, 3e-2),    # bf16 MXU operands, f32 accumulation
    ]
    for n, use_bf16, tol in cases:
        x = jax.random.normal(jax.random.fold_in(kx, n), (n, f_in), jnp.float32)
        out = jax.block_until_ready(
            ensemble_forward(x, w1, b1, w2, b2,
                             block_n=test_block_n, use_bf16_mxu=use_bf16))
        ref = reference_forward(x, w1, b1, w2, b2)
        ok &= out.shape == (n, f_out)
        ok &= bool(jnp.allclose(out, ref, atol=tol, rtol=tol))

    if ok:
        print("KERNEL_OK")
    else:
        raise SystemExit("mismatch vs reference")
</pallas_src>

<mosaic_0001>
module attributes {stable_mosaic.version = 11 : i64} {
  func.func @ensemble_kernel(%arg0: i32, %arg1: memref<256x4xf32, #tpu.memory_space<vmem>>, %arg2: memref<4x256xf32, #tpu.memory_space<vmem>>, %arg3: memref<1x256xf32, #tpu.memory_space<vmem>>, %arg4: memref<256x2xf32, #tpu.memory_space<vmem>>, %arg5: memref<1x2xf32, #tpu.memory_space<vmem>>, %arg6: memref<256x2xf32, #tpu.memory_space<vmem>>) attributes {dimension_semantics = [#tpu.dimension_semantics<parallel>], iteration_bounds = array<i64: 3>, scalar_prefetch = 0 : i64, scratch_operands = 0 : i64, tpu.core_type = #tpu.core_type<tc>, window_params = [{transform_indices = @transform_0, window_bounds = array<i64: 256, 4>}, {pipeline_mode = #tpu.pipeline_mode<synchronous>, transform_indices = @transform_1, window_bounds = array<i64: 4, 256>}, {pipeline_mode = #tpu.pipeline_mode<synchronous>, transform_indices = @transform_2, window_bounds = array<i64: 1, 256>}, {pipeline_mode = #tpu.pipeline_mode<synchronous>, transform_indices = @transform_3, window_bounds = array<i64: 256, 2>}, {pipeline_mode = #tpu.pipeline_mode<synchronous>, transform_indices = @transform_4, window_bounds = array<i64: 1, 2>}, {transform_indices = @transform_5, window_bounds = array<i64: 256, 2>}]} {
    %c0 = arith.constant 0 : index
    %c0_0 = arith.constant 0 : index
    %0 = vector.load %arg1[%c0, %c0_0] : memref<256x4xf32, #tpu.memory_space<vmem>>, vector<256x4xf32>
    %c0_1 = arith.constant 0 : index
    %c0_2 = arith.constant 0 : index
    %1 = vector.load %arg2[%c0_1, %c0_2] : memref<4x256xf32, #tpu.memory_space<vmem>>, vector<4x256xf32>
    %cst = arith.constant dense<0.000000e+00> : vector<256x256xf32>
    %2 = tpu.matmul %0, %1, %cst {dimension_numbers = #tpu.dot_dimension_numbers<[1], [0], [0], [1], [0, 0, 1, 1], [], []>} : vector<256x4xf32>, vector<4x256xf32>, vector<256x256xf32> -> vector<256x256xf32>
    %c0_3 = arith.constant 0 : index
    %c0_4 = arith.constant 0 : index
    %3 = vector.load %arg3[%c0_3, %c0_4] : memref<1x256xf32, #tpu.memory_space<vmem>>, vector<1x256xf32>
    %4 = vector.broadcast %3 : vector<1x256xf32> to vector<256x256xf32>
    %5 = arith.addf %2, %4 : vector<256x256xf32>
    %cst_5 = arith.constant 5.000000e-01 : f32
    %6 = vector.broadcast %cst_5 : f32 to vector<256x256xf32>
    %7 = arith.mulf %6, %5 : vector<256x256xf32>
    %8 = math.tanh %7 : vector<256x256xf32>
    %cst_6 = arith.constant 1.000000e+00 : f32
    %9 = vector.broadcast %cst_6 : f32 to vector<256x256xf32>
    %10 = arith.addf %8, %9 : vector<256x256xf32>
    %11 = arith.mulf %7, %10 : vector<256x256xf32>
    %c0_7 = arith.constant 0 : index
    %c0_8 = arith.constant 0 : index
    %12 = vector.load %arg4[%c0_7, %c0_8] : memref<256x2xf32, #tpu.memory_space<vmem>>, vector<256x2xf32>
    %cst_9 = arith.constant dense<0.000000e+00> : vector<256x2xf32>
    %13 = tpu.matmul %11, %12, %cst_9 {dimension_numbers = #tpu.dot_dimension_numbers<[1], [0], [0], [1], [0, 0, 1, 1], [], []>} : vector<256x256xf32>, vector<256x2xf32>, vector<256x2xf32> -> vector<256x2xf32>
    %c0_10 = arith.constant 0 : index
    %c0_11 = arith.constant 0 : index
    %14 = vector.load %arg5[%c0_10, %c0_11] : memref<1x2xf32, #tpu.memory_space<vmem>>, vector<1x2xf32>
    %15 = vector.broadcast %14 : vector<1x2xf32> to vector<256x2xf32>
    %16 = arith.addf %13, %15 : vector<256x2xf32>
    %c0_12 = arith.constant 0 : index
    %c0_13 = arith.constant 0 : index
    %17 = vector.load %arg6[%c0_12, %c0_13] : memref<256x2xf32, #tpu.memory_space<vmem>>, vector<256x2xf32>
    tpu.vector_store %arg6[%c0_12, %c0_13], %16 {strides = array<i32>} : memref<256x2xf32, #tpu.memory_space<vmem>>, vector<256x2xf32>,
    return
  }
  func.func @transform_0(%arg0: i32) -> (i32, i32) {
    %c0_i32 = arith.constant 0 : i32
    %c0_i32_0 = arith.constant 0 : i32
    return %arg0, %c0_i32 : i32, i32
  }
  func.func @transform_1(%arg0: i32) -> (i32, i32) {
    %c0_i32 = arith.constant 0 : i32
    %c0_i32_0 = arith.constant 0 : i32
    %c0_i32_1 = arith.constant 0 : i32
    return %c0_i32, %c0_i32_0 : i32, i32
  }
  func.func @transform_2(%arg0: i32) -> (i32, i32) {
    %c0_i32 = arith.constant 0 : i32
    %c0_i32_0 = arith.constant 0 : i32
    %c0_i32_1 = arith.constant 0 : i32
    return %c0_i32, %c0_i32_0 : i32, i32
  }
  func.func @transform_3(%arg0: i32) -> (i32, i32) {
    %c0_i32 = arith.constant 0 : i32
    %c0_i32_0 = arith.constant 0 : i32
    %c0_i32_1 = arith.constant 0 : i32
    return %c0_i32, %c0_i32_0 : i32, i32
  }
  func.func @transform_4(%arg0: i32) -> (i32, i32) {
    %c0_i32 = arith.constant 0 : i32
    %c0_i32_0 = arith.constant 0 : i32
    %c0_i32_1 = arith.constant 0 : i32
    return %c0_i32, %c0_i32_0 : i32, i32
  }
  func.func @transform_5(%arg0: i32) -> (i32, i32) {
    %c0_i32 = arith.constant 0 : i32
    %c0_i32_0 = arith.constant 0 : i32
    return %arg0, %c0_i32 : i32, i32
  }
}

</mosaic_0001>

<llo_original>
// kernel: ensemble_forward.1
$region0: #{ensemble_forward.1}
  #allocation0 [shape = 'u32[]', space=smem, size = 0x4, offset = 0x4, fixed_abs, tag = 'smem constant byte address 0x4 - core index']
  #allocation1 [shape = 'u32[144,128]{1,0:T(1,128)}', space=vmem, size = 0x12000, scoped, tag = 'internal scratch']
  %s0 = inlined_call_operand.vmem [shape: f32[768,4], index: 0, kind: input, shape index: {}]
  %s1 = inlined_call_operand.vmem [shape: f32[4,256], index: 1, kind: input, shape index: {}]
  %s2 = inlined_call_operand.vmem [shape: f32[1,256], index: 2, kind: input, shape index: {}]
  %s3 = inlined_call_operand.vmem [shape: f32[256,2], index: 3, kind: input, shape index: {}]
  %s4 = inlined_call_operand.vmem [shape: f32[1,2], index: 4, kind: input, shape index: {}]
  %s5 = inlined_call_operand.vmem [shape: f32[768,2], index: 5, kind: output, shape index: {}]
  %s6 = sld [smem:[#allocation0]]
  $region53: #{ensemble_forward.1} parent=0
    _
  %s8 = ssub.s32 1, %s6
  %s9 = scalar_select 0, %s8, %s6
  loop: start=0, step=1, limit=5
  $region2: #{ensemble_forward.1} parent=0 // loop_pre_header
    _
  $region3: #{ensemble_forward.1} parent=0 // loop_header
    %s11 = sphi 0, %s15
    %p12 = scmp.ge.s32.totalorder %s11, 5
    %s21 = sphi 0, %s23
    %s24 = sphi 0, %s21
    %s25 = sphi 0, %s24
    %s41 = sphi 0, %s25
    %s45 = sphi 0, %s45
    %s47 = sphi 0, %s45
    %s48 = sphi 0, %s47
    %s62 = sphi 0, %s48
    %s66 = sphi 0, %s66
    %s68 = sphi 0, %s66
    %s69 = sphi 0, %s68
    %s83 = sphi 0, %s69
    %s87 = sphi 0, %s87
    %s89 = sphi 0, %s87
    %s90 = sphi 0, %s89
    %s104 = sphi 0, %s90
    %s108 = sphi 0, %s108
    %s110 = sphi 0, %s108
    %s111 = sphi 0, %s110
    %s125 = sphi 0, %s111
    %s131 = sphi 0, %s133
    %s134 = sphi 0, %s131
    %s135 = sphi 0, %s134
    %s151 = sphi 0, %s135
  $region4: #{ensemble_forward.1} parent=0 // loop_header_branch
    %14 = sbr.rel (%p12) target = $region8
  $region5: #{ensemble_forward.1} parent=0 // loop_body
    %s16 = ssub.s32 %s11, 1
    %s17 = ssub.s32 %s11, 2
    %s18 = sadd.s32 %s11, 1
    %s19 = ssub.s32 %s11, %s18
    %p20 = scmp.eq.s32.totalorder %s19, 0
    %s22 = sadd.s32 %s21, 1
    %s23 = scalar_select %p20, %s21, %s22
    %p26 = pneg %p20
    %p27 = scmp.eq.s32.totalorder %s11, 2
    %p28 = por %p26, %p27
    %p29 = scmp.ne.s32.totalorder %s21, %s24
    %p30 = scmp.eq.s32.totalorder %s11, 0
    %p31 = por %p29, %p30
    %p32 = scmp.ne.s32.totalorder %s21, %s24
    %p33 = scmp.eq.s32.totalorder %s16, 2
    %p34 = por %p32, %p33
    %p35 = scmp.ne.s32.totalorder %s24, %s25
    %p36 = scmp.eq.s32.totalorder %s16, 0
    %p37 = por %p35, %p36
    %p38 = scmp.ne.s32.totalorder %s24, %s25
    %p39 = scmp.eq.s32.totalorder %s17, 2
    %p40 = por %p38, %p39
    %p42 = scmp.ne.s32.totalorder %s25, %s41
    %p43 = scmp.eq.s32.totalorder %s17, 0
    %p44 = por %p42, %p43
    %s46 = sadd.s32 %s45, 1
    %p49 = scmp.eq.s32.totalorder %s11, 2
    %p50 = scmp.ne.s32.totalorder %s45, %s47
    %p51 = scmp.eq.s32.totalorder %s11, 0
    %p52 = por %p50, %p51
    %p53 = scmp.ne.s32.totalorder %s45, %s47
    %p54 = scmp.eq.s32.totalorder %s16, 2
    %p55 = por %p53, %p54
    %p56 = scmp.ne.s32.totalorder %s47, %s48
    %p57 = scmp.eq.s32.totalorder %s16, 0
    %p58 = por %p56, %p57
    %p59 = scmp.ne.s32.totalorder %s47, %s48
    %p60 = scmp.eq.s32.totalorder %s17, 2
    %p61 = por %p59, %p60
    %p63 = scmp.ne.s32.totalorder %s48, %s62
    %p64 = scmp.eq.s32.totalorder %s17, 0
    %p65 = por %p63, %p64
    %s67 = sadd.s32 %s66, 1
    %p70 = scmp.eq.s32.totalorder %s11, 2
    %p71 = scmp.ne.s32.totalorder %s66, %s68
    %p72 = scmp.eq.s32.totalorder %s11, 0
    %p73 = por %p71, %p72
    %p74 = scmp.ne.s32.totalorder %s66, %s68
    %p75 = scmp.eq.s32.totalorder %s16, 2
    %p76 = por %p74, %p75
    %p77 = scmp.ne.s32.totalorder %s68, %s69
    %p78 = scmp.eq.s32.totalorder %s16, 0
    %p79 = por %p77, %p78
    %p80 = scmp.ne.s32.totalorder %s68, %s69
    %p81 = scmp.eq.s32.totalorder %s17, 2
    %p82 = por %p80, %p81
    %p84 = scmp.ne.s32.totalorder %s69, %s83
    %p85 = scmp.eq.s32.totalorder %s17, 0
    %p86 = por %p84, %p85
    %s88 = sadd.s32 %s87, 1
    %p91 = scmp.eq.s32.totalorder %s11, 2
    %p92 = scmp.ne.s32.totalorder %s87, %s89
    %p93 = scmp.eq.s32.totalorder %s11, 0
    %p94 = por %p92, %p93
    %p95 = scmp.ne.s32.totalorder %s87, %s89
    %p96 = scmp.eq.s32.totalorder %s16, 2
    %p97 = por %p95, %p96
    %p98 = scmp.ne.s32.totalorder %s89, %s90
    %p99 = scmp.eq.s32.totalorder %s16, 0
    %p100 = por %p98, %p99
    %p101 = scmp.ne.s32.totalorder %s89, %s90
    %p102 = scmp.eq.s32.totalorder %s17, 2
    %p103 = por %p101, %p102
    %p105 = scmp.ne.s32.totalorder %s90, %s104
    %p106 = scmp.eq.s32.totalorder %s17, 0
    %p107 = por %p105, %p106
    %s109 = sadd.s32 %s108, 1
    %p112 = scmp.eq.s32.totalorder %s11, 2
    %p113 = scmp.ne.s32.totalorder %s108, %s110
    %p114 = scmp.eq.s32.totalorder %s11, 0
    %p115 = por %p113, %p114
    %p116 = scmp.ne.s32.totalorder %s108, %s110
    %p117 = scmp.eq.s32.totalorder %s16, 2
    %p118 = por %p116, %p117
    %p119 = scmp.ne.s32.totalorder %s110, %s111
    %p120 = scmp.eq.s32.totalorder %s16, 0
    %p121 = por %p119, %p120
    %p122 = scmp.ne.s32.totalorder %s110, %s111
    %p123 = scmp.eq.s32.totalorder %s17, 2
    %p124 = por %p122, %p123
    %p126 = scmp.ne.s32.totalorder %s111, %s125
    %p127 = scmp.eq.s32.totalorder %s17, 0
    %p128 = por %p126, %p127
    %s129 = ssub.s32 %s11, %s18
    %p130 = scmp.eq.s32.totalorder %s129, 0
    %s132 = sadd.s32 %s131, 1
    %s133 = scalar_select %p130, %s131, %s132
    %p136 = pneg %p130
    %p137 = scmp.eq.s32.totalorder %s11, 2
    %p138 = por %p136, %p137
    %p139 = scmp.ne.s32.totalorder %s131, %s134
    %p140 = scmp.eq.s32.totalorder %s11, 0
    %p141 = por %p139, %p140
    %p142 = scmp.ne.s32.totalorder %s131, %s134
    %p143 = scmp.eq.s32.totalorder %s16, 2
    %p144 = por %p142, %p143
    %p145 = scmp.ne.s32.totalorder %s134, %s135
    %p146 = scmp.eq.s32.totalorder %s16, 0
    %p147 = por %p145, %p146
    %p148 = scmp.ne.s32.totalorder %s134, %s135
    %p149 = scmp.eq.s32.totalorder %s17, 2
    %p150 = por %p148, %p149
    %p152 = scmp.ne.s32.totalorder %s135, %s151
    %p153 = scmp.eq.s32.totalorder %s17, 0
    %p154 = por %p152, %p153
    %p155 = scmp.le.s32.totalorder 1, %s11
    %p156 = scmp.lt.s32.totalorder %s11, 4
    %p157 = pnand %p155, %p156
    %p158 = pneg %p157
    // Predicated region
    $region9: #{ensemble_forward.1} parent=5 // pred_check
      _
    $region10: #{ensemble_forward.1} parent=5 // pred_check_branch
      %160 = sbr.rel (%p157) target = $region12
    $region11: #{ensemble_forward.1} parent=5 // pred_region
      %s161 = ssub.s32 %s11, 1
      // Predicated region
      $region13: #{ensemble_forward.1} parent=11 // pred_check
        %p162 = pneg %p58
      $region14: #{ensemble_forward.1} parent=11 // pred_check_branch
        %164 = sbr.rel (%p162) target = $region16
      $region15: #{ensemble_forward.1} parent=11 // pred_region
        _
      $region16: #{ensemble_forward.1} parent=11 // pred_fallthru
        _
      // Predicated region
      $region17: #{ensemble_forward.1} parent=11 // pred_check
        %p165 = pneg %p79
      $region18: #{ensemble_forward.1} parent=11 // pred_check_branch
        %167 = sbr.rel (%p165) target = $region20
      $region19: #{ensemble_forward.1} parent=11 // pred_region
        _
      $region20: #{ensemble_forward.1} parent=11 // pred_fallthru
        _
      // Predicated region
      $region21: #{ensemble_forward.1} parent=11 // pred_check
        %p168 = pneg %p100
      $region22: #{ensemble_forward.1} parent=11 // pred_check_branch
        %170 = sbr.rel (%p168) target = $region24
      $region23: #{ensemble_forward.1} parent=11 // pred_region
        _
      $region24: #{ensemble_forward.1} parent=11 // pred_fallthru
        _
      // Predicated region
      $region25: #{ensemble_forward.1} parent=11 // pred_check
        %p171 = pneg %p121
      $region26: #{ensemble_forward.1} parent=11 // pred_check_branch
        %173 = sbr.rel (%p171) target = $region28
      $region27: #{ensemble_forward.1} parent=11 // pred_region
        _
      $region28: #{ensemble_forward.1} parent=11 // pred_fallthru
        _
    $region12: #{ensemble_forward.1} parent=5 // pred_fallthru
      _
    %p174 = scmp.lt.s32.totalorder %s11, 3
    // Predicated region
    $region29: #{ensemble_forward.1} parent=5 // pred_check
      %p175 = pneg %p174
    $region30: #{ensemble_forward.1} parent=5 // pred_check_branch
      %177 = sbr.rel (%p175) target = $region32
    $region31: #{ensemble_forward.1} parent=5 // pred_region
      // Predicated region
      $region33: #{ensemble_forward.1} parent=31 // pred_check
        %p178 = pneg %p31
      $region34: #{ensemble_forward.1} parent=31 // pred_check_branch
        %180 = sbr.rel (%p178) target = $region36
      $region35: #{ensemble_forward.1} parent=31 // pred_region
        %s181 = smul.u32 32, %s11
        %p182 = scmp.lt.s32.totalorder %s181, 95
        %s183 = scalar_select %p182, %s181, 95
        %s184 = smul.addr %s183, 8
        %s185 = scalar_lea.vmem %s0, %s184
        %s186 = smul.u32 32, %s11
      $region36: #{ensemble_forward.1} parent=31 // pred_fallthru
        _
    $region32: #{ensemble_forward.1} parent=5 // pred_fallthru
      _
    %p187 = scmp.le.s32.totalorder 1, %s11
    %p188 = scmp.lt.s32.totalorder %s11, 4
    %p189 = pnand %p187, %p188
    %p190 = pneg %p189
    // Predicated region
    $region37: #{ensemble_forward.1} parent=5 // pred_check
      _
    $region38: #{ensemble_forward.1} parent=5 // pred_check_branch
      %192 = sbr.rel (%p189) target = $region40
    $region39: #{ensemble_forward.1} parent=5 // pred_region
      %s193 = ssub.s32 %s11, 1
      %s194 = smul.u32 32, %s16
      %p195 = scmp.lt.s32.totalorder %s194, 95
      %s196 = scalar_select %p195, %s194, 95
      %s197 = smul.addr %s196, 8
      %s198 = scalar_lea.vmem %s0, %s197
      %p199 = pneg %p37
      %p200 = pneg %p34
      %p201 = pneg %p58
      %p202 = pneg %p55
      %p203 = pneg %p79
      %p204 = pneg %p76
      %p205 = pneg %p100
      %p206 = pneg %p97
      %p207 = pneg %p121
      %p208 = pneg %p118
      %p209 = pneg %p147
      %p210 = pneg %p144
      %s211 = smul.u32 32, %s16
      %p212 = scmp.lt.s32.totalorder %s211, 95
      %s213 = scalar_select %p212, %s211, 95
      %s214 = smul.addr %s213, 8
      %s215 = scalar_lea.vmem %s5, %s214
      %s216 = smul.u32 32, %s16
      %p217 = scmp.lt.s32.totalorder %s216, 95
      %s218 = scalar_select %p217, %s216, 95
      %s219 = smul.addr %s218, 8
      %s220 = scalar_lea.vmem %s0, %s219
      %s221 = smul.u32 32, %s16
      %s222 = smul.u32 32, %s16
      %p223 = scmp.lt.s32.totalorder %s222, 95
      %s224 = scalar_select %p223, %s222, 95
      %s225 = smul.addr %s224, 8
      %s226 = scalar_lea.vmem %s5, %s225
      %s227 = smul.u32 32, %s16
      %v228 = vld [vmem:[%s220] sm:$0xff]
      %v229 = vld [vmem:[%s220 + $0x8] sm:$0xff]
      %v230 = vld [vmem:[%s220 + $0x10] sm:$0xff]
      %v231 = vld [vmem:[%s220 + $0x18] sm:$0xff]
      %v232 = vld [vmem:[%s220 + $0x20] sm:$0xff]
      %v233 = vld [vmem:[%s220 + $0x28] sm:$0xff]
      %v234 = vld [vmem:[%s220 + $0x30] sm:$0xff]
      %v235 = vld [vmem:[%s220 + $0x38] sm:$0xff]
      %v236 = vld [vmem:[%s220 + $0x40] sm:$0xff]
      %v237 = vld [vmem:[%s220 + $0x48] sm:$0xff]
      %v238 = vld [vmem:[%s220 + $0x50] sm:$0xff]
      %v239 = vld [vmem:[%s220 + $0x58] sm:$0xff]
      %v240 = vld [vmem:[%s220 + $0x60] sm:$0xff]
      %v241 = vld [vmem:[%s220 + $0x68] sm:$0xff]
      %v242 = vld [vmem:[%s220 + $0x70] sm:$0xff]
      %v243 = vld [vmem:[%s220 + $0x78] sm:$0xff]
      %v244 = vld [vmem:[%s220 + $0x80] sm:$0xff]
      %v245 = vld [vmem:[%s220 + $0x88] sm:$0xff]
      %v246 = vld [vmem:[%s220 + $0x90] sm:$0xff]
      %v247 = vld [vmem:[%s220 + $0x98] sm:$0xff]
      %v248 = vld [vmem:[%s220 + $0xa0] sm:$0xff]
      %v249 = vld [vmem:[%s220 + $0xa8] sm:$0xff]
      %v250 = vld [vmem:[%s220 + $0xb0] sm:$0xff]
      %v251 = vld [vmem:[%s220 + $0xb8] sm:$0xff]
      %v252 = vld [vmem:[%s220 + $0xc0] sm:$0xff]
      %v253 = vld [vmem:[%s220 + $0xc8] sm:$0xff]
      %v254 = vld [vmem:[%s220 + $0xd0] sm:$0xff]
      %v255 = vld [vmem:[%s220 + $0xd8] sm:$0xff]
      %v256 = vld [vmem:[%s220 + $0xe0] sm:$0xff]
      %v257 = vld [vmem:[%s220 + $0xe8] sm:$0xff]
      %v258 = vld [vmem:[%s220 + $0xf0] sm:$0xff]
      %v259 = vld [vmem:[%s220 + $0xf8] sm:$0xff]
      %v260 = vld [vmem:[%s1] sm:$0xff]
      %v261 = vld [vmem:[%s2] sm:$0x3]
      %v263 = vlaneseq
      %v264 = vshrl.u32 %v263, 7
      %v265 = vsub.s32 0, %v264
      %v266 = vrot.slane %v261, %v265
      %v267 = vlaneseq
      %v268 = vshrl.u32 %v267, 7
      %v269 = vsub.s32 1, %v268
      %v270 = vrot.slane %v261, %v269
      %v274 = vcombine.high %v260, %v260
      %vm275 = vcmask 31744
      %v277 = vsel %vm275, %v228, 0
      %v280 = vsel %vm275, %v229, 0
      %v283 = vsel %vm275, %v230, 0
      %v286 = vsel %vm275, %v231, 0
      %v289 = vsel %vm275, %v232, 0
      %v292 = vsel %vm275, %v233, 0
      %v295 = vsel %vm275, %v234, 0
      %v298 = vsel %vm275, %v235, 0
      %v301 = vsel %vm275, %v236, 0
      %v304 = vsel %vm275, %v237, 0
      %v307 = vsel %vm275, %v238, 0
      %v310 = vsel %vm275, %v239, 0
      %v313 = vsel %vm275, %v240, 0
      %v316 = vsel %vm275, %v241, 0
      %v319 = vsel %vm275, %v242, 0
      %v322 = vsel %vm275, %v243, 0
      %v325 = vsel %vm275, %v244, 0
      %v328 = vsel %vm275, %v245, 0
      %v331 = vsel %vm275, %v246, 0
      %v334 = vsel %vm275, %v247, 0
      %v337 = vsel %vm275, %v248, 0
      %v340 = vsel %vm275, %v249, 0
      %v343 = vsel %vm275, %v250, 0
      %v346 = vsel %vm275, %v251, 0
      %v349 = vsel %vm275, %v252, 0
      %v352 = vsel %vm275, %v253, 0
      %v355 = vsel %vm275, %v254, 0
      %v358 = vsel %vm275, %v255, 0
      %v361 = vsel %vm275, %v256, 0
      %v364 = vsel %vm275, %v257, 0
      %v367 = vsel %vm275, %v258, 0
      %v370 = vsel %vm275, %v259, 0
      %vm372 = vcmask 1043456
      %v373 = vsel %vm372, %v260, 0
      %v375 = vsel %vm372, %v274, 0
      %377 = vmatprep.subr.mxu0 %v375
      %378 = vmatpush1.msra.mxu0 %v373
      %379 = vmatprep.subr.mxu0 0.0
      %380 = vmatpush1.msra.mxu0 0.0
      %381 = vmatprep.subr.mxu0 0.0
      %382 = vmatpush1.msra.mxu0 0.0
      %383 = vmatprep.subr.mxu0 0.0
      %384 = vmatpush1.msra.mxu0 0.0
      %385 = vmatprep.subr.mxu0 0.0
      %386 = vmatpush1.msra.mxu0 0.0
      %387 = vmatprep.subr.mxu0 0.0
      %388 = vmatpush1.msra.mxu0 0.0
      %389 = vmatprep.subr.mxu0 0.0
      %390 = vmatpush1.msra.mxu0 0.0
      %391 = vmatprep.subr.mxu0 0.0
      %392 = vmatpush1.msra.mxu0 0.0
      %393 = vmatprep.subr.mxu0 0.0
      %394 = vmatpush1.msra.mxu0 0.0
      %395 = vmatprep.subr.mxu0 0.0
      %396 = vmatpush1.msra.mxu0 0.0
      %397 = vmatprep.subr.mxu0 0.0
      %398 = vmatpush1.msra.mxu0 0.0
      %399 = vmatprep.subr.mxu0 0.0
      %400 = vmatpush1.msra.mxu0 0.0
      %401 = vmatprep.subr.mxu0 0.0
      %402 = vmatpush1.msra.mxu0 0.0
      %403 = vmatprep.subr.mxu0 0.0
      %404 = vmatpush1.msra.mxu0 0.0
      %405 = vmatprep.subr.mxu0 0.0
      %406 = vmatpush1.msra.mxu0 0.0
      %407 = vmatprep.subr.mxu0 0.0
      %408 = vmatpush1.msra.mxu0 0.0
      %409 = vmatprep.subr.mxu0 0.0
      %410 = vmatpush1.msra.mxu0 0.0
      %411 = vmatprep.subr.mxu0 0.0
      %412 = vmatpush1.msra.mxu0 0.0
      %413 = vmatprep.subr.mxu0 0.0
      %414 = vmatpush1.msra.mxu0 0.0
      %415 = vmatprep.subr.mxu0 0.0
      %416 = vmatpush1.msra.mxu0 0.0
      %417 = vmatprep.subr.mxu0 0.0
      %418 = vmatpush1.msra.mxu0 0.0
      %419 = vmatprep.subr.mxu0 0.0
      %420 = vmatpush1.msra.mxu0 0.0
      %421 = vmatprep.subr.mxu0 0.0
      %422 = vmatpush1.msra.mxu0 0.0
      %423 = vmatprep.subr.mxu0 0.0
      %424 = vmatpush1.msra.mxu0 0.0
      %425 = vmatprep.subr.mxu0 0.0
      %426 = vmatpush1.msra.mxu0 0.0
      %427 = vmatprep.subr.mxu0 0.0
      %428 = vmatpush1.msra.mxu0 0.0
      %429 = vmatprep.subr.mxu0 0.0
      %430 = vmatpush1.msra.mxu0 0.0
      %431 = vmatprep.subr.mxu0 0.0
      %432 = vmatpush1.msra.mxu0 0.0
      %433 = vmatprep.subr.mxu0 0.0
      %434 = vmatpush1.msra.mxu0 0.0
      %435 = vmatprep.subr.mxu0 0.0
      %436 = vmatpush1.msra.mxu0 0.0
      %437 = vmatprep.subr.mxu0 0.0
      %438 = vmatpush1.msra.mxu0 0.0
      %439 = vmatprep.subr.mxu0 0.0
      %440 = vmatpush1.msra.mxu0 0.0
      %441 = vmatprep.mubr.f32.mxu0 0.0
      %442 = vmatmul.mubr.f32.gmra.mrb[0].mxu0 %v277
      %v443 = vpop.f32.mrb[0].mxu0
      %v444 = vadd.f32 %v266, %v443
      %v445 = vpop.f32.mrb[0].mxu0
      %v446 = vadd.f32 %v270, %v445
      %447 = vmatprep.mubr.f32.mxu0 0.0
      %448 = vmatmul.mubr.f32.gmra.mrb[0].mxu0 %v280
      %v449 = vpop.f32.mrb[0].mxu0
      %v450 = vadd.f32 %v266, %v449
      %v451 = vpop.f32.mrb[0].mxu0
      %v452 = vadd.f32 %v270, %v451
      %453 = vmatprep.mubr.f32.mxu0 0.0
      %454 = vmatmul.mubr.f32.gmra.mrb[0].mxu0 %v283
      %v455 = vpop.f32.mrb[0].mxu0
      %v456 = vadd.f32 %v266, %v455
      %v457 = vpop.f32.mrb[0].mxu0
      %v458 = vadd.f32 %v270, %v457
      %459 = vmatprep.mubr.f32.mxu0 0.0
      %460 = vmatmul.mubr.f32.gmra.mrb[0].mxu0 %v286
      %v461 = vpop.f32.mrb[0].mxu0
      %v462 = vadd.f32 %v266, %v461
      %v463 = vpop.f32.mrb[0].mxu0
      %v464 = vadd.f32 %v270, %v463
      %465 = vmatprep.mubr.f32.mxu0 0.0
      %466 = vmatmul.mubr.f32.gmra.mrb[0].mxu0 %v289
      %v467 = vpop.f32.mrb[0].mxu0
      %v468 = vadd.f32 %v266, %v467
      %v469 = vpop.f32.mrb[0].mxu0
      %v470 = vadd.f32 %v270, %v469
      %471 = vmatprep.mubr.f32.mxu0 0.0
      %472 = vmatmul.mubr.f32.gmra.mrb[0].mxu0 %v292
      %v473 = vpop.f32.mrb[0].mxu0
      %v474 = vadd.f32 %v266, %v473
      %v475 = vpop.f32.mrb[0].mxu0
      %v476 = vadd.f32 %v270, %v475
      %477 = vmatprep.mubr.f32.mxu0 0.0
      %478 = vmatmul.mubr.f32.gmra.mrb[0].mxu0 %v295
      %v479 = vpop.f32.mrb[0].mxu0
      %v480 = vadd.f32 %v266, %v479
      %v481 = vpop.f32.mrb[0].mxu0
      %v482 = vadd.f32 %v270, %v481
      %483 = vmatprep.mubr.f32.mxu0 0.0
      %484 = vmatmul.mubr.f32.gmra.mrb[0].mxu0 %v298
      %v485 = vpop.f32.mrb[0].mxu0
      %v486 = vadd.f32 %v266, %v485
      %v487 = vpop.f32.mrb[0].mxu0
      %v488 = vadd.f32 %v270, %v487
      %489 = vmatprep.mubr.f32.mxu0 0.0
      %490 = vmatmul.mubr.f32.gmra.mrb[0].mxu0 %v301
      %v491 = vpop.f32.mrb[0].mxu0
      %v492 = vadd.f32 %v266, %v491
      %v493 = vpop.f32.mrb[0].mxu0
      %v494 = vadd.f32 %v270, %v493
      %495 = vmatprep.mubr.f32.mxu0 0.0
      %496 = vmatmul.mubr.f32.gmra.mrb[0].mxu0 %v304
      %v497 = vpop.f32.mrb[0].mxu0
      %v498 = vadd.f32 %v266, %v497
      %v499 = vpop.f32.mrb[0].mxu0
      %v500 = vadd.f32 %v270, %v499
      %501 = vmatprep.mubr.f32.mxu0 0.0
      %502 = vmatmul.mubr.f32.gmra.mrb[0].mxu0 %v307
      %v503 = vpop.f32.mrb[0].mxu0
      %v504 = vadd.f32 %v266, %v503
      %v505 = vpop.f32.mrb[0].mxu0
      %v506 = vadd.f32 %v270, %v505
      %507 = vmatprep.mubr.f32.mxu0 0.0
      %508 = vmatmul.mubr.f32.gmra.mrb[0].mxu0 %v310
      %v509 = vpop.f32.mrb[0].mxu0
      %v510 = vadd.f32 %v266, %v509
      %v511 = vpop.f32.mrb[0].mxu0
      %v512 = vadd.f32 %v270, %v511
      %513 = vmatprep.mubr.f32.mxu0 0.0
      %514 = vmatmul.mubr.f32.gmra.mrb[0].mxu0 %v313
      %v515 = vpop.f32.mrb[0].mxu0
      %v516 = vadd.f32 %v266, %v515
      %v517 = vpop.f32.mrb[0].mxu0
      %v518 = vadd.f32 %v270, %v517
      %519 = vmatprep.mubr.f32.mxu0 0.0
      %520 = vmatmul.mubr.f32.gmra.mrb[0].mxu0 %v316
      %v521 = vpop.f32.mrb[0].mxu0
      %v522 = vadd.f32 %v266, %v521
      %v523 = vpop.f32.mrb[0].mxu0
      %v524 = vadd.f32 %v270, %v523
      %525 = vmatprep.mubr.f32.mxu0 0.0
      %526 = vmatmul.mubr.f32.gmra.mrb[0].mxu0 %v319
      %v527 = vpop.f32.mrb[0].mxu0
      %v528 = vadd.f32 %v266, %v527
      %v529 = vpop.f32.mrb[0].mxu0
      %v530 = vadd.f32 %v270, %v529
      %531 = vmatprep.mubr.f32.mxu0 0.0
      %532 = vmatmul.mubr.f32.gmra.mrb[0].mxu0 %v322
      %v533 = vpop.f32.mrb[0].mxu0
      %v534 = vadd.f32 %v266, %v533
      %v535 = vpop.f32.mrb[0].mxu0
      %v536 = vadd.f32 %v270, %v535
      %537 = vmatprep.mubr.f32.mxu0 0.0
      %538 = vmatmul.mubr.f32.gmra.mrb[0].mxu0 %v325
      %v539 = vpop.f32.mrb[0].mxu0
      %v540 = vadd.f32 %v266, %v539
      %v541 = vpop.f32.mrb[0].mxu0
      %v542 = vadd.f32 %v270, %v541
      %543 = vmatprep.mubr.f32.mxu0 0.0
      %544 = vmatmul.mubr.f32.gmra.mrb[0].mxu0 %v328
      %v545 = vpop.f32.mrb[0].mxu0
      %v546 = vadd.f32 %v266, %v545
      %v547 = vpop.f32.mrb[0].mxu0
      %v548 = vadd.f32 %v270, %v547
      %549 = vmatprep.mubr.f32.mxu0 0.0
      %550 = vmatmul.mubr.f32.gmra.mrb[0].mxu0 %v331
      %v551 = vpop.f32.mrb[0].mxu0
      %v552 = vadd.f32 %v266, %v551
      %v553 = vpop.f32.mrb[0].mxu0
      %v554 = vadd.f32 %v270, %v553
      %555 = vmatprep.mubr.f32.mxu0 0.0
      %556 = vmatmul.mubr.f32.gmra.mrb[0].mxu0 %v334
      %v557 = vpop.f32.mrb[0].mxu0
      %v558 = vadd.f32 %v266, %v557
      %v559 = vpop.f32.mrb[0].mxu0
      %v560 = vadd.f32 %v270, %v559
      %561 = vmatprep.mubr.f32.mxu0 0.0
      %562 = vmatmul.mubr.f32.gmra.mrb[0].mxu0 %v337
      %v563 = vpop.f32.mrb[0].mxu0
      %v564 = vadd.f32 %v266, %v563
      %v565 = vpop.f32.mrb[0].mxu0
      %v566 = vadd.f32 %v270, %v565
      %567 = vmatprep.mubr.f32.mxu0 0.0
      %568 = vmatmul.mubr.f32.gmra.mrb[0].mxu0 %v340
      %v569 = vpop.f32.mrb[0].mxu0
      %v570 = vadd.f32 %v266, %v569
      %v571 = vpop.f32.mrb[0].mxu0
      %v572 = vadd.f32 %v270, %v571
      %573 = vmatprep.mubr.f32.mxu0 0.0
      %574 = vmatmul.mubr.f32.gmra.mrb[0].mxu0 %v343
      %v575 = vpop.f32.mrb[0].mxu0
      %v576 = vadd.f32 %v266, %v575
      %v577 = vpop.f32.mrb[0].mxu0
      %v578 = vadd.f32 %v270, %v577
      %579 = vmatprep.mubr.f32.mxu0 0.0
      %580 = vmatmul.mubr.f32.gmra.mrb[0].mxu0 %v346
      %v581 = vpop.f32.mrb[0].mxu0
      %v582 = vadd.f32 %v266, %v581
      %v583 = vpop.f32.mrb[0].mxu0
      %v584 = vadd.f32 %v270, %v583
      %585 = vmatprep.mubr.f32.mxu0 0.0
      %586 = vmatmul.mubr.f32.gmra.mrb[0].mxu0 %v349
      %v587 = vpop.f32.mrb[0].mxu0
      %v588 = vadd.f32 %v266, %v587
      %v589 = vpop.f32.mrb[0].mxu0
      %v590 = vadd.f32 %v270, %v589
      %591 = vmatprep.mubr.f32.mxu0 0.0
      %592 = vmatmul.mubr.f32.gmra.mrb[0].mxu0 %v352
      %v593 = vpop.f32.mrb[0].mxu0
      %v594 = vadd.f32 %v266, %v593
      %v595 = vpop.f32.mrb[0].mxu0
      %v596 = vadd.f32 %v270, %v595
      %597 = vmatprep.mubr.f32.mxu0 0.0
      %598 = vmatmul.mubr.f32.gmra.mrb[0].mxu0 %v355
      %v599 = vpop.f32.mrb[0].mxu0
      %v600 = vadd.f32 %v266, %v599
      %v601 = vpop.f32.mrb[0].mxu0
      %v602 = vadd.f32 %v270, %v601
      %603 = vmatprep.mubr.f32.mxu0 0.0
      %604 = vmatmul.mubr.f32.gmra.mrb[0].mxu0 %v358
      %v605 = vpop.f32.mrb[0].mxu0
      %v606 = vadd.f32 %v266, %v605
      %v607 = vpop.f32.mrb[0].mxu0
      %v608 = vadd.f32 %v270, %v607
      %609 = vmatprep.mubr.f32.mxu0 0.0
      %610 = vmatmul.mubr.f32.gmra.mrb[0].mxu0 %v361
      %v611 = vpop.f32.mrb[0].mxu0
      %v612 = vadd.f32 %v266, %v611
      %v613 = vpop.f32.mrb[0].mxu0
      %v614 = vadd.f32 %v270, %v613
      %615 = vmatprep.mubr.f32.mxu0 0.0
      %616 = vmatmul.mubr.f32.gmra.mrb[0].mxu0 %v364
      %v617 = vpop.f32.mrb[0].mxu0
      %v618 = vadd.f32 %v266, %v617
      %v619 = vpop.f32.mrb[0].mxu0
      %v620 = vadd.f32 %v270, %v619
      %621 = vmatprep.mubr.f32.mxu0 0.0
      %622 = vmatmul.mubr.f32.gmra.mrb[0].mxu0 %v367
      %v623 = vpop.f32.mrb[0].mxu0
      %v624 = vadd.f32 %v266, %v623
      %v625 = vpop.f32.mrb[0].mxu0
      %v626 = vadd.f32 %v270, %v625
      %627 = vmatprep.mubr.f32.mxu0 0.0
      %628 = vmatmul.mubr.f32.gmra.mrb[0].mxu0 %v370
      %v629 = vpop.f32.mrb[0].mxu0
      %v630 = vadd.f32 %v266, %v629
      %v631 = vpop.f32.mrb[0].mxu0
      %v632 = vadd.f32 %v270, %v631
      %633 = vdwg.mxu0
      %v634 = vmul.f32 %v444, 0.5
      %v635 = vmul.f32 %v446, 0.5
      %v636 = vmul.f32 %v450, 0.5
      %v637 = vmul.f32 %v452, 0.5
      %v638 = vmul.f32 %v456, 0.5
      %v639 = vmul.f32 %v458, 0.5
      %v640 = vmul.f32 %v462, 0.5
      %v641 = vmul.f32 %v464, 0.5
      %v642 = vmul.f32 %v468, 0.5
      %v643 = vmul.f32 %v470, 0.5
      %v644 = vmul.f32 %v474, 0.5
      %v645 = vmul.f32 %v476, 0.5
      %v646 = vmul.f32 %v480, 0.5
      %v647 = vmul.f32 %v482, 0.5
      %v648 = vmul.f32 %v486, 0.5
      %v649 = vmul.f32 %v488, 0.5
      %v650 = vmul.f32 %v492, 0.5
      %v651 = vmul.f32 %v494, 0.5
      %v652 = vmul.f32 %v498, 0.5
      %v653 = vmul.f32 %v500, 0.5
      %v654 = vmul.f32 %v504, 0.5
      %v655 = vmul.f32 %v506, 0.5
      %v656 = vmul.f32 %v510, 0.5
      %v657 = vmul.f32 %v512, 0.5
      %v658 = vmul.f32 %v516, 0.5
      %v659 = vmul.f32 %v518, 0.5
      %v660 = vmul.f32 %v522, 0.5
      %v661 = vmul.f32 %v524, 0.5
      %v662 = vmul.f32 %v528, 0.5
      %v663 = vmul.f32 %v530, 0.5
      %v664 = vmul.f32 %v534, 0.5
      %v665 = vmul.f32 %v536, 0.5
      %v666 = vmul.f32 %v540, 0.5
      %v667 = vmul.f32 %v542, 0.5
      %v668 = vmul.f32 %v546, 0.5
      %v669 = vmul.f32 %v548, 0.5
      %v670 = vmul.f32 %v552, 0.5
      %v671 = vmul.f32 %v554, 0.5
      %v672 = vmul.f32 %v558, 0.5
      %v673 = vmul.f32 %v560, 0.5
      %v674 = vmul.f32 %v564, 0.5
      %v675 = vmul.f32 %v566, 0.5
      %v676 = vmul.f32 %v570, 0.5
      %v677 = vmul.f32 %v572, 0.5
      %v678 = vmul.f32 %v576, 0.5
      %v679 = vmul.f32 %v578, 0.5
      %v680 = vmul.f32 %v582, 0.5
      %v681 = vmul.f32 %v584, 0.5
      %v682 = vmul.f32 %v588, 0.5
      %v683 = vmul.f32 %v590, 0.5
      %v684 = vmul.f32 %v594, 0.5
      %v685 = vmul.f32 %v596, 0.5
      %v686 = vmul.f32 %v600, 0.5
      %v687 = vmul.f32 %v602, 0.5
      %v688 = vmul.f32 %v606, 0.5
      %v689 = vmul.f32 %v608, 0.5
      %v690 = vmul.f32 %v612, 0.5
      %v691 = vmul.f32 %v614, 0.5
      %v692 = vmul.f32 %v618, 0.5
      %v693 = vmul.f32 %v620, 0.5
      %v694 = vmul.f32 %v624, 0.5
      %v695 = vmul.f32 %v626, 0.5
      %v696 = vmul.f32 %v630, 0.5
      %v697 = vmul.f32 %v632, 0.5
      %v698 = vtanh.pop %v634
      %v699 = vtanh.pop %v635
      %v700 = vtanh.pop %v636
      %v701 = vtanh.pop %v637
      %v702 = vtanh.pop %v638
      %v703 = vtanh.pop %v639
      %v704 = vtanh.pop %v640
      %v705 = vtanh.pop %v641
      %v706 = vtanh.pop %v642
      %v707 = vtanh.pop %v643
      %v708 = vtanh.pop %v644
      %v709 = vtanh.pop %v645
      %v710 = vtanh.pop %v646
      %v711 = vtanh.pop %v647
      %v712 = vtanh.pop %v648
      %v713 = vtanh.pop %v649
      %v714 = vtanh.pop %v650
      %v715 = vtanh.pop %v651
      %v716 = vtanh.pop %v652
      %v717 = vtanh.pop %v653
      %v718 = vtanh.pop %v654
      %v719 = vtanh.pop %v655
      %v720 = vtanh.pop %v656
      %v721 = vtanh.pop %v657
      %v722 = vtanh.pop %v658
      %v723 = vtanh.pop %v659
      %v724 = vtanh.pop %v660
      %v725 = vtanh.pop %v661
      %v726 = vtanh.pop %v662
      %v727 = vtanh.pop %v663
      %v728 = vtanh.pop %v664
      %v729 = vtanh.pop %v665
      %v730 = vtanh.pop %v666
      %v731 = vtanh.pop %v667
      %v732 = vtanh.pop %v668
      %v733 = vtanh.pop %v669
      %v734 = vtanh.pop %v670
      %v735 = vtanh.pop %v671
      %v736 = vtanh.pop %v672
      %v737 = vtanh.pop %v673
      %v738 = vtanh.pop %v674
      %v739 = vtanh.pop %v675
      %v740 = vtanh.pop %v676
      %v741 = vtanh.pop %v677
      %v742 = vtanh.pop %v678
      %v743 = vtanh.pop %v679
      %v744 = vtanh.pop %v680
      %v745 = vtanh.pop %v681
      %v746 = vtanh.pop %v682
      %v747 = vtanh.pop %v683
      %v748 = vtanh.pop %v684
      %v749 = vtanh.pop %v685
      %v750 = vtanh.pop %v686
      %v751 = vtanh.pop %v687
      %v752 = vtanh.pop %v688
      %v753 = vtanh.pop %v689
      %v754 = vtanh.pop %v690
      %v755 = vtanh.pop %v691
      %v756 = vtanh.pop %v692
      %v757 = vtanh.pop %v693
      %v758 = vtanh.pop %v694
      %v759 = vtanh.pop %v695
      %v760 = vtanh.pop %v696
      %v761 = vtanh.pop %v697
      %v762 = vadd.f32 %v698, 1.0
      %v763 = vadd.f32 %v699, 1.0
      %v764 = vadd.f32 %v700, 1.0
      %v765 = vadd.f32 %v701, 1.0
      %v766 = vadd.f32 %v702, 1.0
      %v767 = vadd.f32 %v703, 1.0
      %v768 = vadd.f32 %v704, 1.0
      %v769 = vadd.f32 %v705, 1.0
      %v770 = vadd.f32 %v706, 1.0
      %v771 = vadd.f32 %v707, 1.0
      %v772 = vadd.f32 %v708, 1.0
      %v773 = vadd.f32 %v709, 1.0
      %v774 = vadd.f32 %v710, 1.0
      %v775 = vadd.f32 %v711, 1.0
      %v776 = vadd.f32 %v712, 1.0
      %v777 = vadd.f32 %v713, 1.0
      %v778 = vadd.f32 %v714, 1.0
      %v779 = vadd.f32 %v715, 1.0
      %v780 = vadd.f32 %v716, 1.0
      %v781 = vadd.f32 %v717, 1.0
      %v782 = vadd.f32 %v718, 1.0
      %v783 = vadd.f32 %v719, 1.0
      %v784 = vadd.f32 %v720, 1.0
      %v785 = vadd.f32 %v721, 1.0
      %v786 = vadd.f32 %v722, 1.0
      %v787 = vadd.f32 %v723, 1.0
      %v788 = vadd.f32 %v724, 1.0
      %v789 = vadd.f32 %v725, 1.0
      %v790 = vadd.f32 %v726, 1.0
      %v791 = vadd.f32 %v727, 1.0
      %v792 = vadd.f32 %v728, 1.0
      %v793 = vadd.f32 %v729, 1.0
      %v794 = vadd.f32 %v730, 1.0
      %v795 = vadd.f32 %v731, 1.0
      %v796 = vadd.f32 %v732, 1.0
      %v797 = vadd.f32 %v733, 1.0
      %v798 = vadd.f32 %v734, 1.0
      %v799 = vadd.f32 %v735, 1.0
      %v800 = vadd.f32 %v736, 1.0
      %v801 = vadd.f32 %v737, 1.0
      %v802 = vadd.f32 %v738, 1.0
      %v803 = vadd.f32 %v739, 1.0
      %v804 = vadd.f32 %v740, 1.0
      %v805 = vadd.f32 %v741, 1.0
      %v806 = vadd.f32 %v742, 1.0
      %v807 = vadd.f32 %v743, 1.0
      %v808 = vadd.f32 %v744, 1.0
      %v809 = vadd.f32 %v745, 1.0
      %v810 = vadd.f32 %v746, 1.0
      %v811 = vadd.f32 %v747, 1.0
      %v812 = vadd.f32 %v748, 1.0
      %v813 = vadd.f32 %v749, 1.0
      %v814 = vadd.f32 %v750, 1.0
      %v815 = vadd.f32 %v751, 1.0
      %v816 = vadd.f32 %v752, 1.0
      %v817 = vadd.f32 %v753, 1.0
      %v818 = vadd.f32 %v754, 1.0
      %v819 = vadd.f32 %v755, 1.0
      %v820 = vadd.f32 %v756, 1.0
      %v821 = vadd.f32 %v757, 1.0
      %v822 = vadd.f32 %v758, 1.0
      %v823 = vadd.f32 %v759, 1.0
      %v824 = vadd.f32 %v760, 1.0
      %v825 = vadd.f32 %v761, 1.0
      %v826 = vmul.f32 %v634, %v762
      %v827 = vmul.f32 %v635, %v763
      %v828 = vmul.f32 %v636, %v764
      %v829 = vmul.f32 %v637, %v765
      %v830 = vmul.f32 %v638, %v766
      %v831 = vmul.f32 %v639, %v767
      %v832 = vmul.f32 %v640, %v768
      %v833 = vmul.f32 %v641, %v769
      %v834 = vmul.f32 %v642, %v770
      %v835 = vmul.f32 %v643, %v771
      %v836 = vmul.f32 %v644, %v772
      %v837 = vmul.f32 %v645, %v773
      %v838 = vmul.f32 %v646, %v774
      %v839 = vmul.f32 %v647, %v775
      %v840 = vmul.f32 %v648, %v776
      %v841 = vmul.f32 %v649, %v777
      %v842 = vmul.f32 %v650, %v778
      %v843 = vmul.f32 %v651, %v779
      %v844 = vmul.f32 %v652, %v780
      %v845 = vmul.f32 %v653, %v781
      %v846 = vmul.f32 %v654, %v782
      %v847 = vmul.f32 %v655, %v783
      %v848 = vmul.f32 %v656, %v784
      %v849 = vmul.f32 %v657, %v785
      %v850 = vmul.f32 %v658, %v786
      %v851 = vmul.f32 %v659, %v787
      %v852 = vmul.f32 %v660, %v788
      %v853 = vmul.f32 %v661, %v789
      %v854 = vmul.f32 %v662, %v790
      %v855 = vmul.f32 %v663, %v791
      %v856 = vmul.f32 %v664, %v792
      %v857 = vmul.f32 %v665, %v793
      %v858 = vmul.f32 %v666, %v794
      %v859 = vmul.f32 %v667, %v795
      %v860 = vmul.f32 %v668, %v796
      %v861 = vmul.f32 %v669, %v797
      %v862 = vmul.f32 %v670, %v798
      %v863 = vmul.f32 %v671, %v799
      %v864 = vmul.f32 %v672, %v800
      %v865 = vmul.f32 %v673, %v801
      %v866 = vmul.f32 %v674, %v802
      %v867 = vmul.f32 %v675, %v803
      %v868 = vmul.f32 %v676, %v804
      %v869 = vmul.f32 %v677, %v805
      %v870 = vmul.f32 %v678, %v806
      %v871 = vmul.f32 %v679, %v807
      %v872 = vmul.f32 %v680, %v808
      %v873 = vmul.f32 %v681, %v809
      %v874 = vmul.f32 %v682, %v810
      %v875 = vmul.f32 %v683, %v811
      %v876 = vmul.f32 %v684, %v812
      %v877 = vmul.f32 %v685, %v813
      %v878 = vmul.f32 %v686, %v814
      %v879 = vmul.f32 %v687, %v815
      %v880 = vmul.f32 %v688, %v816
      %v881 = vmul.f32 %v689, %v817
      %v882 = vmul.f32 %v690, %v818
      %v883 = vmul.f32 %v691, %v819
      %v884 = vmul.f32 %v692, %v820
      %v885 = vmul.f32 %v693, %v821
      %v886 = vmul.f32 %v694, %v822
      %v887 = vmul.f32 %v695, %v823
      %v888 = vmul.f32 %v696, %v824
      %v889 = vmul.f32 %v697, %v825
      %v890 = vld [vmem:[%s3] sm:$0xff]
      %v891 = vld [vmem:[%s3 + $0x8] sm:$0xff]
      %v892 = vld [vmem:[%s3 + $0x10] sm:$0xff]
      %v893 = vld [vmem:[%s3 + $0x18] sm:$0xff]
      %v894 = vld [vmem:[%s3 + $0x20] sm:$0xff]
      %v895 = vld [vmem:[%s3 + $0x28] sm:$0xff]
      %v896 = vld [vmem:[%s3 + $0x30] sm:$0xff]
      %v897 = vld [vmem:[%s3 + $0x38] sm:$0xff]
      %v898 = vld [vmem:[%s3 + $0x40] sm:$0xff]
      %v899 = vld [vmem:[%s3 + $0x48] sm:$0xff]
      %v900 = vld [vmem:[%s3 + $0x50] sm:$0xff]
      %v901 = vld [vmem:[%s3 + $0x58] sm:$0xff]
      %v902 = vld [vmem:[%s3 + $0x60] sm:$0xff]
      %v903 = vld [vmem:[%s3 + $0x68] sm:$0xff]
      %v904 = vld [vmem:[%s3 + $0x70] sm:$0xff]
      %v905 = vld [vmem:[%s3 + $0x78] sm:$0xff]
      %v906 = vld [vmem:[%s3 + $0x80] sm:$0xff]
      %v907 = vld [vmem:[%s3 + $0x88] sm:$0xff]
      %v908 = vld [vmem:[%s3 + $0x90] sm:$0xff]
      %v909 = vld [vmem:[%s3 + $0x98] sm:$0xff]
      %v910 = vld [vmem:[%s3 + $0xa0] sm:$0xff]
      %v911 = vld [vmem:[%s3 + $0xa8] sm:$0xff]
      %v912 = vld [vmem:[%s3 + $0xb0] sm:$0xff]
      %v913 = vld [vmem:[%s3 + $0xb8] sm:$0xff]
      %v914 = vld [vmem:[%s3 + $0xc0] sm:$0xff]
      %v915 = vld [vmem:[%s3 + $0xc8] sm:$0xff]
      %v916 = vld [vmem:[%s3 + $0xd0] sm:$0xff]
      %v917 = vld [vmem:[%s3 + $0xd8] sm:$0xff]
      %v918 = vld [vmem:[%s3 + $0xe0] sm:$0xff]
      %v919 = vld [vmem:[%s3 + $0xe8] sm:$0xff]
      %v920 = vld [vmem:[%s3 + $0xf0] sm:$0xff]
      %v921 = vld [vmem:[%s3 + $0xf8] sm:$0xff]
      %v922 = vld [vmem:[%s4] sm:$0x1]
      %v924 = vlaneseq
      %v925 = vshrl.u32 %v924, 7
      %v926 = vsub.s32 0, %v925
      %v927 = vrot.slane %v922, %v926
      %929 = vmatprep.subr.mxu0 0.0
      %930 = vmatpush1.msra.mxu0 %v890
      %931 = vmatprep.subr.mxu0 0.0
      %932 = vmatpush1.msra.mxu0 %v891
      %933 = vmatprep.subr.mxu0 0.0
      %934 = vmatpush1.msra.mxu0 %v892
      %935 = vmatprep.subr.mxu0 0.0
      %936 = vmatpush1.msra.mxu0 %v893
      %937 = vmatprep.subr.mxu0 0.0
      %938 = vmatpush1.msra.mxu0 %v894
      %939 = vmatprep.subr.mxu0 0.0
      %940 = vmatpush1.msra.mxu0 %v895
      %941 = vmatprep.subr.mxu0 0.0
      %942 = vmatpush1.msra.mxu0 %v896
      %943 = vmatprep.subr.mxu0 0.0
      %944 = vmatpush1.msra.mxu0 %v897
      %945 = vmatprep.subr.mxu0 0.0
      %946 = vmatpush1.msra.mxu0 %v898
      %947 = vmatprep.subr.mxu0 0.0
      %948 = vmatpush1.msra.mxu0 %v899
      %949 = vmatprep.subr.mxu0 0.0
      %950 = vmatpush1.msra.mxu0 %v900
      %951 = vmatprep.subr.mxu0 0.0
      %952 = vmatpush1.msra.mxu0 %v901
      %953 = vmatprep.subr.mxu0 0.0
      %954 = vmatpush1.msra.mxu0 %v902
      %955 = vmatprep.subr.mxu0 0.0
      %956 = vmatpush1.msra.mxu0 %v903
      %957 = vmatprep.subr.mxu0 0.0
      %958 = vmatpush1.msra.mxu0 %v904
      %959 = vmatprep.subr.mxu0 0.0
      %960 = vmatpush1.msra.mxu0 %v905
      %961 = vmatprep.subr.mxu0 0.0
      %962 = vmatpush1.msra.mxu0 %v906
      %963 = vmatprep.subr.mxu0 0.0
      %964 = vmatpush1.msra.mxu0 %v907
      %965 = vmatprep.subr.mxu0 0.0
      %966 = vmatpush1.msra.mxu0 %v908
      %967 = vmatprep.subr.mxu0 0.0
      %968 = vmatpush1.msra.mxu0 %v909
      %969 = vmatprep.subr.mxu0 0.0
      %970 = vmatpush1.msra.mxu0 %v910
      %971 = vmatprep.subr.mxu0 0.0
      %972 = vmatpush1.msra.mxu0 %v911
      %973 = vmatprep.subr.mxu0 0.0
      %974 = vmatpush1.msra.mxu0 %v912
      %975 = vmatprep.subr.mxu0 0.0
      %976 = vmatpush1.msra.mxu0 %v913
      %977 = vmatprep.subr.mxu0 0.0
      %978 = vmatpush1.msra.mxu0 %v914
      %979 = vmatprep.subr.mxu0 0.0
      %980 = vmatpush1.msra.mxu0 %v915
      %981 = vmatprep.subr.mxu0 0.0
      %982 = vmatpush1.msra.mxu0 %v916
      %983 = vmatprep.subr.mxu0 0.0
      %984 = vmatpush1.msra.mxu0 %v917
      %985 = vmatprep.subr.mxu0 0.0
      %986 = vmatpush1.msra.mxu0 %v918
      %987 = vmatprep.subr.mxu0 0.0
      %988 = vmatpush1.msra.mxu0 %v919
      %989 = vmatprep.subr.mxu0 0.0
      %990 = vmatpush1.msra.mxu0 %v920
      %991 = vmatprep.subr.mxu0 0.0
      %992 = vmatpush1.msra.mxu0 %v921
      %993 = vmatprep.mubr.f32.mxu0 %v827
      %994 = vmatmul.mubr.f32.gmra.mrb[0].mxu0 %v826
      %v995 = vpop.f32.mrb[0].mxu0
      %v996 = vadd.f32 %v927, %v995
      %v997 = vpop.f32.mrb[0].mxu0
      %998 = vmatprep.mubr.f32.mxu0 %v829
      %999 = vmatmul.mubr.f32.gmra.mrb[0].mxu0 %v828
      %v1000 = vpop.f32.mrb[0].mxu0
      %v1001 = vadd.f32 %v927, %v1000
      %v1002 = vpop.f32.mrb[0].mxu0
      %1003 = vmatprep.mubr.f32.mxu0 %v831
      %1004 = vmatmul.mubr.f32.gmra.mrb[0].mxu0 %v830
      %v1005 = vpop.f32.mrb[0].mxu0
      %v1006 = vadd.f32 %v927, %v1005
      %v1007 = vpop.f32.mrb[0].mxu0
      %1008 = vmatprep.mubr.f32.mxu0 %v833
      %1009 = vmatmul.mubr.f32.gmra.mrb[0].mxu0 %v832
      %v1010 = vpop.f32.mrb[0].mxu0
      %v1011 = vadd.f32 %v927, %v1010
      %v1012 = vpop.f32.mrb[0].mxu0
      %1013 = vmatprep.mubr.f32.mxu0 %v835
      %1014 = vmatmul.mubr.f32.gmra.mrb[0].mxu0 %v834
      %v1015 = vpop.f32.mrb[0].mxu0
      %v1016 = vadd.f32 %v927, %v1015
      %v1017 = vpop.f32.mrb[0].mxu0
      %1018 = vmatprep.mubr.f32.mxu0 %v837
      %1019 = vmatmul.mubr.f32.gmra.mrb[0].mxu0 %v836
      %v1020 = vpop.f32.mrb[0].mxu0
      %v1021 = vadd.f32 %v927, %v1020
      %v1022 = vpop.f32.mrb[0].mxu0
      %1023 = vmatprep.mubr.f32.mxu0 %v839
      %1024 = vmatmul.mubr.f32.gmra.mrb[0].mxu0 %v838
      %v1025 = vpop.f32.mrb[0].mxu0
      %v1026 = vadd.f32 %v927, %v1025
      %v1027 = vpop.f32.mrb[0].mxu0
      %1028 = vmatprep.mubr.f32.mxu0 %v841
      %1029 = vmatmul.mubr.f32.gmra.mrb[0].mxu0 %v840
      %v1030 = vpop.f32.mrb[0].mxu0
      %v1031 = vadd.f32 %v927, %v1030
      %v1032 = vpop.f32.mrb[0].mxu0
      %1033 = vmatprep.mubr.f32.mxu0 %v843
      %1034 = vmatmul.mubr.f32.gmra.mrb[0].mxu0 %v842
      %v1035 = vpop.f32.mrb[0].mxu0
      %v1036 = vadd.f32 %v927, %v1035
      %v1037 = vpop.f32.mrb[0].mxu0
      %1038 = vmatprep.mubr.f32.mxu0 %v845
      %1039 = vmatmul.mubr.f32.gmra.mrb[0].mxu0 %v844
      %v1040 = vpop.f32.mrb[0].mxu0
      %v1041 = vadd.f32 %v927, %v1040
      %v1042 = vpop.f32.mrb[0].mxu0
      %1043 = vmatprep.mubr.f32.mxu0 %v847
      %1044 = vmatmul.mubr.f32.gmra.mrb[0].mxu0 %v846
      %v1045 = vpop.f32.mrb[0].mxu0
      %v1046 = vadd.f32 %v927, %v1045
      %v1047 = vpop.f32.mrb[0].mxu0
      %1048 = vmatprep.mubr.f32.mxu0 %v849
      %1049 = vmatmul.mubr.f32.gmra.mrb[0].mxu0 %v848
      %v1050 = vpop.f32.mrb[0].mxu0
      %v1051 = vadd.f32 %v927, %v1050
      %v1052 = vpop.f32.mrb[0].mxu0
      %1053 = vmatprep.mubr.f32.mxu0 %v851
      %1054 = vmatmul.mubr.f32.gmra.mrb[0].mxu0 %v850
      %v1055 = vpop.f32.mrb[0].mxu0
      %v1056 = vadd.f32 %v927, %v1055
      %v1057 = vpop.f32.mrb[0].mxu0
      %1058 = vmatprep.mubr.f32.mxu0 %v853
      %1059 = vmatmul.mubr.f32.gmra.mrb[0].mxu0 %v852
      %v1060 = vpop.f32.mrb[0].mxu0
      %v1061 = vadd.f32 %v927, %v1060
      %v1062 = vpop.f32.mrb[0].mxu0
      %1063 = vmatprep.mubr.f32.mxu0 %v855
      %1064 = vmatmul.mubr.f32.gmra.mrb[0].mxu0 %v854
      %v1065 = vpop.f32.mrb[0].mxu0
      %v1066 = vadd.f32 %v927, %v1065
      %v1067 = vpop.f32.mrb[0].mxu0
      %1068 = vmatprep.mubr.f32.mxu0 %v857
      %1069 = vmatmul.mubr.f32.gmra.mrb[0].mxu0 %v856
      %v1070 = vpop.f32.mrb[0].mxu0
      %v1071 = vadd.f32 %v927, %v1070
      %v1072 = vpop.f32.mrb[0].mxu0
      %1073 = vmatprep.mubr.f32.mxu0 %v859
      %1074 = vmatmul.mubr.f32.gmra.mrb[0].mxu0 %v858
      %v1075 = vpop.f32.mrb[0].mxu0
      %v1076 = vadd.f32 %v927, %v1075
      %v1077 = vpop.f32.mrb[0].mxu0
      %1078 = vmatprep.mubr.f32.mxu0 %v861
      %1079 = vmatmul.mubr.f32.gmra.mrb[0].mxu0 %v860
      %v1080 = vpop.f32.mrb[0].mxu0
      %v1081 = vadd.f32 %v927, %v1080
      %v1082 = vpop.f32.mrb[0].mxu0
      %1083 = vmatprep.mubr.f32.mxu0 %v863
      %1084 = vmatmul.mubr.f32.gmra.mrb[0].mxu0 %v862
      %v1085 = vpop.f32.mrb[0].mxu0
      %v1086 = vadd.f32 %v927, %v1085
      %v1087 = vpop.f32.mrb[0].mxu0
      %1088 = vmatprep.mubr.f32.mxu0 %v865
      %1089 = vmatmul.mubr.f32.gmra.mrb[0].mxu0 %v864
      %v1090 = vpop.f32.mrb[0].mxu0
      %v1091 = vadd.f32 %v927, %v1090
      %v1092 = vpop.f32.mrb[0].mxu0
      %1093 = vmatprep.mubr.f32.mxu0 %v867
      %1094 = vmatmul.mubr.f32.gmra.mrb[0].mxu0 %v866
      %v1095 = vpop.f32.mrb[0].mxu0
      %v1096 = vadd.f32 %v927, %v1095
      %v1097 = vpop.f32.mrb[0].mxu0
      %1098 = vmatprep.mubr.f32.mxu0 %v869
      %1099 = vmatmul.mubr.f32.gmra.mrb[0].mxu0 %v868
      %v1100 = vpop.f32.mrb[0].mxu0
      %v1101 = vadd.f32 %v927, %v1100
      %v1102 = vpop.f32.mrb[0].mxu0
      %1103 = vmatprep.mubr.f32.mxu0 %v871
      %1104 = vmatmul.mubr.f32.gmra.mrb[0].mxu0 %v870
      %v1105 = vpop.f32.mrb[0].mxu0
      %v1106 = vadd.f32 %v927, %v1105
      %v1107 = vpop.f32.mrb[0].mxu0
      %1108 = vmatprep.mubr.f32.mxu0 %v873
      %1109 = vmatmul.mubr.f32.gmra.mrb[0].mxu0 %v872
      %v1110 = vpop.f32.mrb[0].mxu0
      %v1111 = vadd.f32 %v927, %v1110
      %v1112 = vpop.f32.mrb[0].mxu0
      %1113 = vmatprep.mubr.f32.mxu0 %v875
      %1114 = vmatmul.mubr.f32.gmra.mrb[0].mxu0 %v874
      %v1115 = vpop.f32.mrb[0].mxu0
      %v1116 = vadd.f32 %v927, %v1115
      %v1117 = vpop.f32.mrb[0].mxu0
      %1118 = vmatprep.mubr.f32.mxu0 %v877
      %1119 = vmatmul.mubr.f32.gmra.mrb[0].mxu0 %v876
      %v1120 = vpop.f32.mrb[0].mxu0
      %v1121 = vadd.f32 %v927, %v1120
      %v1122 = vpop.f32.mrb[0].mxu0
      %1123 = vmatprep.mubr.f32.mxu0 %v879
      %1124 = vmatmul.mubr.f32.gmra.mrb[0].mxu0 %v878
      %v1125 = vpop.f32.mrb[0].mxu0
      %v1126 = vadd.f32 %v927, %v1125
      %v1127 = vpop.f32.mrb[0].mxu0
      %1128 = vmatprep.mubr.f32.mxu0 %v881
      %1129 = vmatmul.mubr.f32.gmra.mrb[0].mxu0 %v880
      %v1130 = vpop.f32.mrb[0].mxu0
      %v1131 = vadd.f32 %v927, %v1130
      %v1132 = vpop.f32.mrb[0].mxu0
      %1133 = vmatprep.mubr.f32.mxu0 %v883
      %1134 = vmatmul.mubr.f32.gmra.mrb[0].mxu0 %v882
      %v1135 = vpop.f32.mrb[0].mxu0
      %v1136 = vadd.f32 %v927, %v1135
      %v1137 = vpop.f32.mrb[0].mxu0
      %1138 = vmatprep.mubr.f32.mxu0 %v885
      %1139 = vmatmul.mubr.f32.gmra.mrb[0].mxu0 %v884
      %v1140 = vpop.f32.mrb[0].mxu0
      %v1141 = vadd.f32 %v927, %v1140
      %v1142 = vpop.f32.mrb[0].mxu0
      %1143 = vmatprep.mubr.f32.mxu0 %v887
      %1144 = vmatmul.mubr.f32.gmra.mrb[0].mxu0 %v886
      %v1145 = vpop.f32.mrb[0].mxu0
      %v1146 = vadd.f32 %v927, %v1145
      %v1147 = vpop.f32.mrb[0].mxu0
      %1148 = vmatprep.mubr.f32.mxu0 %v889
      %1149 = vmatmul.mubr.f32.gmra.mrb[0].mxu0 %v888
      %v1150 = vpop.f32.mrb[0].mxu0
      %v1151 = vadd.f32 %v927, %v1150
      %v1152 = vpop.f32.mrb[0].mxu0
      %1153 = vdwg.mxu0
      %vm1154 = vcmask 15360
      %1155 = vst.msk [vmem:[%s226] sm:$0xff] %vm1154, %v996
      %1156 = vst.msk [vmem:[%s226 + $0x8] sm:$0xff] %vm1154, %v1001
      %1157 = vst.msk [vmem:[%s226 + $0x10] sm:$0xff] %vm1154, %v1006
      %1158 = vst.msk [vmem:[%s226 + $0x18] sm:$0xff] %vm1154, %v1011
      %1159 = vst.msk [vmem:[%s226 + $0x20] sm:$0xff] %vm1154, %v1016
      %1160 = vst.msk [vmem:[%s226 + $0x28] sm:$0xff] %vm1154, %v1021
      %1161 = vst.msk [vmem:[%s226 + $0x30] sm:$0xff] %vm1154, %v1026
      %1162 = vst.msk [vmem:[%s226 + $0x38] sm:$0xff] %vm1154, %v1031
      %1163 = vst.msk [vmem:[%s226 + $0x40] sm:$0xff] %vm1154, %v1036
      %1164 = vst.msk [vmem:[%s226 + $0x48] sm:$0xff] %vm1154, %v1041
      %1165 = vst.msk [vmem:[%s226 + $0x50] sm:$0xff] %vm1154, %v1046
      %1166 = vst.msk [vmem:[%s226 + $0x58] sm:$0xff] %vm1154, %v1051
      %1167 = vst.msk [vmem:[%s226 + $0x60] sm:$0xff] %vm1154, %v1056
      %1168 = vst.msk [vmem:[%s226 + $0x68] sm:$0xff] %vm1154, %v1061
      %1169 = vst.msk [vmem:[%s226 + $0x70] sm:$0xff] %vm1154, %v1066
      %1170 = vst.msk [vmem:[%s226 + $0x78] sm:$0xff] %vm1154, %v1071
      %1171 = vst.msk [vmem:[%s226 + $0x80] sm:$0xff] %vm1154, %v1076
      %1172 = vst.msk [vmem:[%s226 + $0x88] sm:$0xff] %vm1154, %v1081
      %1173 = vst.msk [vmem:[%s226 + $0x90] sm:$0xff] %vm1154, %v1086
      %1174 = vst.msk [vmem:[%s226 + $0x98] sm:$0xff] %vm1154, %v1091
      %1175 = vst.msk [vmem:[%s226 + $0xa0] sm:$0xff] %vm1154, %v1096
      %1176 = vst.msk [vmem:[%s226 + $0xa8] sm:$0xff] %vm1154, %v1101
      %1177 = vst.msk [vmem:[%s226 + $0xb0] sm:$0xff] %vm1154, %v1106
      %1178 = vst.msk [vmem:[%s226 + $0xb8] sm:$0xff] %vm1154, %v1111
      %1179 = vst.msk [vmem:[%s226 + $0xc0] sm:$0xff] %vm1154, %v1116
      %1180 = vst.msk [vmem:[%s226 + $0xc8] sm:$0xff] %vm1154, %v1121
      %1181 = vst.msk [vmem:[%s226 + $0xd0] sm:$0xff] %vm1154, %v1126
      %1182 = vst.msk [vmem:[%s226 + $0xd8] sm:$0xff] %vm1154, %v1131
      %1183 = vst.msk [vmem:[%s226 + $0xe0] sm:$0xff] %vm1154, %v1136
      %1184 = vst.msk [vmem:[%s226 + $0xe8] sm:$0xff] %vm1154, %v1141
      %1185 = vst.msk [vmem:[%s226 + $0xf0] sm:$0xff] %vm1154, %v1146
      %1186 = vst.msk [vmem:[%s226 + $0xf8] sm:$0xff] %vm1154, %v1151
      %s1187 = smul.u32 32, %s16
      %p1188 = scmp.lt.s32.totalorder %s1187, 95
      %s1189 = scalar_select %p1188, %s1187, 95
      %s1190 = smul.addr %s1189, 8
      %s1191 = scalar_lea.vmem %s5, %s1190
      // Predicated region
      $region41: #{ensemble_forward.1} parent=39 // pred_check
        %p1192 = pneg %p144
      $region42: #{ensemble_forward.1} parent=39 // pred_check_branch
        %1194 = sbr.rel (%p1192) target = $region44
      $region43: #{ensemble_forward.1} parent=39 // pred_region
        %s1195 = smul.u32 32, %s16
      $region44: #{ensemble_forward.1} parent=39 // pred_fallthru
        _
    $region40: #{ensemble_forward.1} parent=5 // pred_fallthru
      _
    %p1196 = scmp.le.s32.totalorder 2, %s11
    // Predicated region
    $region45: #{ensemble_forward.1} parent=5 // pred_check
      %p1197 = pneg %p1196
    $region46: #{ensemble_forward.1} parent=5 // pred_check_branch
      %1199 = sbr.rel (%p1197) target = $region48
    $region47: #{ensemble_forward.1} parent=5 // pred_region
      %s1200 = ssub.s32 %s11, 2
      // Predicated region
      $region49: #{ensemble_forward.1} parent=47 // pred_check
        %p1201 = pneg %p150
      $region50: #{ensemble_forward.1} parent=47 // pred_check_branch
        %1203 = sbr.rel (%p1201) target = $region52
      $region51: #{ensemble_forward.1} parent=47 // pred_region
        %s1204 = smul.u32 32, %s17
        %p1205 = scmp.lt.s32.totalorder %s1204, 95
        %s1206 = scalar_select %p1205, %s1204, 95
        %s1207 = smul.addr %s1206, 8
        %s1208 = scalar_lea.vmem %s5, %s1207
      $region52: #{ensemble_forward.1} parent=47 // pred_fallthru
        _
    $region48: #{ensemble_forward.1} parent=5 // pred_fallthru
      _
  $region6: #{ensemble_forward.1} parent=0 // loop_footer
    %s15 = sadd.s32 1, %s11
  $region7: #{ensemble_forward.1} parent=0 // loop_footer_branch
    %10 = sbr.rel target = $region3
  $region8: #{ensemble_forward.1} parent=0 // loop_exit
    _

</llo_original>
